<compile_context>
chip_gen: v7x
topology: tpu7x:2x2x1
jax: 0.10.0
libtpu: 0.0.40
codegen_flags: <defaults>
</compile_context>

<pallas_src>
import math

import jax
import jax.numpy as jnp
from jax.experimental import pallas as pl
from jax.experimental.pallas import tpu as pltpu

_SUBLANE = 8       # f32 sublane tile
_MAX_TB = 1024     # max batch tile


def _round_up(x, m):
    return ((x + m - 1) // m) * m


def _vmem_limits():
    """(vmem_limit_bytes or None, tile-sizing budget in bytes), per generation."""
    try:
        cap = int(pltpu.get_tpu_info().vmem_capacity_bytes)
    except Exception:
        # Unknown chip (e.g. interpret mode): stay under every generation's
        # default scoped-VMEM limit (v5e = 16 MiB) and don't override it.
        return None, 12 * 1024 * 1024
    # Half of physical VMEM, capped at 64 MiB: raises the limit on v5e/v6e
    # (128 MiB physical) and stays at/below the default on v7x (64 MiB / TC).
    limit = min(cap // 2, 64 * 1024 * 1024)
    return limit, int(limit * 0.8)   # leave headroom for compiler scratch


def _choose_tile_b(batch, d_in, d_out, budget, x_itemsize):
    """Batch tile: MXU-friendly, fits in budget, >=2 grid steps for big batch."""
    # Double-buffered streaming tiles per batch row: x (input dtype) + out (f32).
    bytes_per_row = 2 * (d_in * x_itemsize + d_out * 4)
    # Resident W/b are ALSO double-buffered by the pipeline -> count 2x (f32 bound).
    resident = 2 * (d_in * d_out + d_out) * 4
    avail = max(budget - resident, bytes_per_row * _SUBLANE)
    tb = min(_MAX_TB, avail // bytes_per_row)
    if tb >= 256:
        tb -= tb % 256          # v6e/v7x MXU is 256-wide
    elif tb >= 128:
        tb -= tb % 128
    else:
        tb = max(_SUBLANE, tb - tb % _SUBLANE)
    # Never larger than the (sublane-rounded) batch.
    tb = min(tb, _round_up(batch, _SUBLANE))
    # v7x megacore: when the batch can usefully split, keep >= 2 grid steps so
    # both TensorCores get work (one extra ~0.35 us step is noise on v5e/v6e).
    if batch > 2 * _SUBLANE:
        tb = min(tb, _round_up(pl.cdiv(batch, 2), _SUBLANE))
    return max(_SUBLANE, tb)


def _logreg_kernel(x_ref, w_ref, b_ref, o_ref):
    # (TB, D_in) @ (D_in, D_out) on the MXU with f32 accumulation.
    z = jnp.dot(x_ref[...], w_ref[...], preferred_element_type=jnp.float32)
    z = z + b_ref[...]                       # (TB, D_out) + (1, D_out)
    # sigmoid(z) = 0.5*tanh(0.5*z) + 0.5 : exact identity, 1 EUP op,
    # mul/add land in free VALU slots.
    o_ref[...] = (0.5 * jnp.tanh(0.5 * z) + 0.5).astype(o_ref.dtype)


def prepare_params(weight, bias, *, use_bf16=False):
    """One-time parameter prep (off the hot path).

    weight: (D_out, D_in) f32 (PyTorch nn.Linear convention); bias: (D_out,).
    Returns (W^T of shape (D_in, D_out), bias row of shape (1, D_out)).
    """
    w_t = jnp.transpose(jnp.asarray(weight))          # (D_in, D_out)
    b_row = jnp.asarray(bias).reshape(1, -1)          # (1, D_out)
    if use_bf16:
        w_t = w_t.astype(jnp.bfloat16)
    return w_t, b_row


def logistic_regression(x, w_t, b_row):
    """x: (B, D_in); w_t: (D_in, D_out); b_row: (1, D_out). Returns (B, D_out) f32."""
    batch, d_in = x.shape
    d_in_w, d_out = w_t.shape
    assert d_in == d_in_w, (d_in, d_in_w)
    if w_t.dtype == jnp.bfloat16:
        x = x.astype(jnp.bfloat16)        # halve HBM streaming bytes on x

    vmem_limit, budget = _vmem_limits()
    tb = _choose_tile_b(batch, d_in, d_out, budget, jnp.dtype(x.dtype).itemsize)
    grid = (pl.cdiv(batch, tb),)          # partial last block handled by Pallas

    cparams = dict(dimension_semantics=("parallel",))
    if vmem_limit is not None:
        cparams["vmem_limit_bytes"] = vmem_limit

    out = pl.pallas_call(
        _logreg_kernel,
        out_shape=jax.ShapeDtypeStruct((batch, d_out), jnp.float32),
        grid_spec=pltpu.PrefetchScalarGridSpec(
            num_scalar_prefetch=0,
            grid=grid,
            in_specs=[
                # x: tiled along batch -> pipelined DMA
                pl.BlockSpec((tb, d_in), lambda i: (i, 0)),
                # weight (already transposed): resident across all grid steps
                pl.BlockSpec((d_in, d_out), lambda i: (0, 0)),
                # bias row: resident across all grid steps
                pl.BlockSpec((1, d_out), lambda i: (0, 0)),
            ],
            out_specs=pl.BlockSpec((tb, d_out), lambda i: (i, 0)),
        ),
        compiler_params=pltpu.CompilerParams(**cparams),
    )(x, w_t, b_row)
    return out


if __name__ == "__main__":
    # Small shapes consistent with the module: batch=8, input_dim=32, output_dim=4
    B, D_in, D_out = 8, 32, 4

    key = jax.random.PRNGKey(0)
    kx, kw, kb = jax.random.split(key, 3)

    x = jax.random.normal(kx, (B, D_in), dtype=jnp.float32)

    # PyTorch nn.Linear default init: U(-1/sqrt(in), 1/sqrt(in))
    bound = 1.0 / math.sqrt(D_in)
    weight = jax.random.uniform(kw, (D_out, D_in), jnp.float32, -bound, bound)
    bias = jax.random.uniform(kb, (D_out,), jnp.float32, -bound, bound)

    # one-time parameter prep (transpose), kept off the per-call hot path
    w_t, b_row = prepare_params(weight, bias, use_bf16=False)

    out = logistic_regression(x, w_t, b_row)
    out = jax.block_until_ready(out)

    ref = jax.nn.sigmoid(x @ weight.T + bias)
    assert out.shape == (B, D_out)
    max_err = float(jnp.max(jnp.abs(out - ref)))
    assert jnp.allclose(out, ref, atol=1e-4, rtol=1e-4), max_err

    print("KERNEL_OK")
</pallas_src>

<mosaic_0001>
module attributes {stable_mosaic.version = 11 : i64} {
  func.func @_logreg_kernel(%arg0: i32, %arg1: memref<8x32xf32, #tpu.memory_space<vmem>>, %arg2: memref<32x4xf32, #tpu.memory_space<vmem>>, %arg3: memref<1x4xf32, #tpu.memory_space<vmem>>, %arg4: memref<8x4xf32, #tpu.memory_space<vmem>>) attributes {dimension_semantics = [#tpu.dimension_semantics<parallel>], iteration_bounds = array<i64: 1>, scalar_prefetch = 0 : i64, scratch_operands = 0 : i64, tpu.core_type = #tpu.core_type<tc>, window_params = [{transform_indices = @transform_0, window_bounds = array<i64: 8, 32>}, {pipeline_mode = #tpu.pipeline_mode<synchronous>, transform_indices = @transform_1, window_bounds = array<i64: 32, 4>}, {pipeline_mode = #tpu.pipeline_mode<synchronous>, transform_indices = @transform_2, window_bounds = array<i64: 1, 4>}, {transform_indices = @transform_3, window_bounds = array<i64: 8, 4>}]} {
    %c0 = arith.constant 0 : index
    %c0_0 = arith.constant 0 : index
    %0 = vector.load %arg1[%c0, %c0_0] : memref<8x32xf32, #tpu.memory_space<vmem>>, vector<8x32xf32>
    %c0_1 = arith.constant 0 : index
    %c0_2 = arith.constant 0 : index
    %1 = vector.load %arg2[%c0_1, %c0_2] : memref<32x4xf32, #tpu.memory_space<vmem>>, vector<32x4xf32>
    %cst = arith.constant dense<0.000000e+00> : vector<8x4xf32>
    %2 = tpu.matmul %0, %1, %cst {dimension_numbers = #tpu.dot_dimension_numbers<[1], [0], [0], [1], [0, 0, 1, 1], [], []>} : vector<8x32xf32>, vector<32x4xf32>, vector<8x4xf32> -> vector<8x4xf32>
    %c0_3 = arith.constant 0 : index
    %c0_4 = arith.constant 0 : index
    %3 = vector.load %arg3[%c0_3, %c0_4] : memref<1x4xf32, #tpu.memory_space<vmem>>, vector<1x4xf32>
    %4 = vector.broadcast %3 : vector<1x4xf32> to vector<8x4xf32>
    %5 = arith.addf %2, %4 : vector<8x4xf32>
    %cst_5 = arith.constant 5.000000e-01 : f32
    %6 = vector.broadcast %cst_5 : f32 to vector<8x4xf32>
    %7 = arith.mulf %6, %5 : vector<8x4xf32>
    %8 = math.tanh %7 : vector<8x4xf32>
    %cst_6 = arith.constant 5.000000e-01 : f32
    %9 = vector.broadcast %cst_6 : f32 to vector<8x4xf32>
    %10 = arith.mulf %9, %8 : vector<8x4xf32>
    %cst_7 = arith.constant 5.000000e-01 : f32
    %11 = vector.broadcast %cst_7 : f32 to vector<8x4xf32>
    %12 = arith.addf %10, %11 : vector<8x4xf32>
    %c0_8 = arith.constant 0 : index
    %c0_9 = arith.constant 0 : index
    %13 = vector.load %arg4[%c0_8, %c0_9] : memref<8x4xf32, #tpu.memory_space<vmem>>, vector<8x4xf32>
    tpu.vector_store %arg4[%c0_8, %c0_9], %12 {strides = array<i32>} : memref<8x4xf32, #tpu.memory_space<vmem>>, vector<8x4xf32>,
    return
  }
  func.func @transform_0(%arg0: i32) -> (i32, i32) {
    %c0_i32 = arith.constant 0 : i32
    %c0_i32_0 = arith.constant 0 : i32
    return %arg0, %c0_i32 : i32, i32
  }
  func.func @transform_1(%arg0: i32) -> (i32, i32) {
    %c0_i32 = arith.constant 0 : i32
    %c0_i32_0 = arith.constant 0 : i32
    %c0_i32_1 = arith.constant 0 : i32
    return %c0_i32, %c0_i32_0 : i32, i32
  }
  func.func @transform_2(%arg0: i32) -> (i32, i32) {
    %c0_i32 = arith.constant 0 : i32
    %c0_i32_0 = arith.constant 0 : i32
    %c0_i32_1 = arith.constant 0 : i32
    return %c0_i32, %c0_i32_0 : i32, i32
  }
  func.func @transform_3(%arg0: i32) -> (i32, i32) {
    %c0_i32 = arith.constant 0 : i32
    %c0_i32_0 = arith.constant 0 : i32
    return %arg0, %c0_i32 : i32, i32
  }
}

</mosaic_0001>

<llo_original>
// kernel: tpu_custom_call.1
$region0: #{tpu_custom_call.1}
  #allocation0 [shape = 'u32[]', space=smem, size = 0x4, offset = 0x4, fixed_abs, tag = 'smem constant byte address 0x4 - core index']
  #allocation1 [shape = 'u32[144,128]{1,0:T(1,128)}', space=vmem, size = 0x12000, scoped, tag = 'internal scratch']
  %s0 = inlined_call_operand.vmem [shape: f32[8,32], index: 0, kind: input, shape index: {}]
  %s1 = inlined_call_operand.vmem [shape: f32[32,4], index: 1, kind: input, shape index: {}]
  %s2 = inlined_call_operand.vmem [shape: f32[1,4], index: 2, kind: input, shape index: {}]
  %s3 = inlined_call_operand.vmem [shape: f32[8,4], index: 3, kind: output, shape index: {}]
  %s4 = sld [smem:[#allocation0]]
  $region22: #{tpu_custom_call.1} parent=0
    _
  %s6 = ssub.s32 1, %s4
  %s7 = scalar_select 0, %s6, %s4
  // Predicated region
  $region2: #{tpu_custom_call.1} parent=0 // pred_check
    _
  $region3: #{tpu_custom_call.1} parent=0 // pred_check_branch
    %9 = sbr.rel (0) target = $region5
  $region4: #{tpu_custom_call.1} parent=0 // pred_region
    _
  $region5: #{tpu_custom_call.1} parent=0 // pred_fallthru
    _
  // Predicated region
  $region6: #{tpu_custom_call.1} parent=0 // pred_check
    _
  $region7: #{tpu_custom_call.1} parent=0 // pred_check_branch
    %11 = sbr.rel (0) target = $region9
  $region8: #{tpu_custom_call.1} parent=0 // pred_region
    _
  $region9: #{tpu_custom_call.1} parent=0 // pred_fallthru
    _
  // Predicated region
  $region10: #{tpu_custom_call.1} parent=0 // pred_check
    _
  $region11: #{tpu_custom_call.1} parent=0 // pred_check_branch
    %13 = sbr.rel (0) target = $region13
  $region12: #{tpu_custom_call.1} parent=0 // pred_region
    _
  $region13: #{tpu_custom_call.1} parent=0 // pred_fallthru
    _
  %v14 = vld [vmem:[%s0] sm:$0xff]
  %v15 = vld [vmem:[%s1] sm:$0xff]
  %v16 = vld [vmem:[%s1 + $0x8] sm:$0xff]
  %v17 = vld [vmem:[%s1 + $0x10] sm:$0xff]
  %v18 = vld [vmem:[%s1 + $0x18] sm:$0xff]
  %v19 = vld [vmem:[%s2] sm:$0x1]
  %v21 = vlaneseq
  %v22 = vshrl.u32 %v21, 7
  %v23 = vsub.s32 0, %v22
  %v24 = vrot.slane %v19, %v23
  %vm26 = vcmask 261120
  %v28 = vsel %vm26, %v14, 0
  %30 = vmatprep.subr.mxu0 0.0
  %31 = vmatpush1.msra.mxu0 %v15
  %32 = vmatprep.subr.mxu0 0.0
  %33 = vmatpush1.msra.mxu0 %v16
  %34 = vmatprep.subr.mxu0 0.0
  %35 = vmatpush1.msra.mxu0 %v17
  %36 = vmatprep.subr.mxu0 0.0
  %37 = vmatpush1.msra.mxu0 %v18
  %38 = vmatprep.subr.mxu0 0.0
  %39 = vmatpush1.msra.mxu0 0.0
  %40 = vmatprep.subr.mxu0 0.0
  %41 = vmatpush1.msra.mxu0 0.0
  %42 = vmatprep.subr.mxu0 0.0
  %43 = vmatpush1.msra.mxu0 0.0
  %44 = vmatprep.subr.mxu0 0.0
  %45 = vmatpush1.msra.mxu0 0.0
  %46 = vmatprep.subr.mxu0 0.0
  %47 = vmatpush1.msra.mxu0 0.0
  %48 = vmatprep.subr.mxu0 0.0
  %49 = vmatpush1.msra.mxu0 0.0
  %50 = vmatprep.subr.mxu0 0.0
  %51 = vmatpush1.msra.mxu0 0.0
  %52 = vmatprep.subr.mxu0 0.0
  %53 = vmatpush1.msra.mxu0 0.0
  %54 = vmatprep.subr.mxu0 0.0
  %55 = vmatpush1.msra.mxu0 0.0
  %56 = vmatprep.subr.mxu0 0.0
  %57 = vmatpush1.msra.mxu0 0.0
  %58 = vmatprep.subr.mxu0 0.0
  %59 = vmatpush1.msra.mxu0 0.0
  %60 = vmatprep.subr.mxu0 0.0
  %61 = vmatpush1.msra.mxu0 0.0
  %62 = vmatprep.subr.mxu0 0.0
  %63 = vmatpush1.msra.mxu0 0.0
  %64 = vmatprep.subr.mxu0 0.0
  %65 = vmatpush1.msra.mxu0 0.0
  %66 = vmatprep.subr.mxu0 0.0
  %67 = vmatpush1.msra.mxu0 0.0
  %68 = vmatprep.subr.mxu0 0.0
  %69 = vmatpush1.msra.mxu0 0.0
  %70 = vmatprep.subr.mxu0 0.0
  %71 = vmatpush1.msra.mxu0 0.0
  %72 = vmatprep.subr.mxu0 0.0
  %73 = vmatpush1.msra.mxu0 0.0
  %74 = vmatprep.subr.mxu0 0.0
  %75 = vmatpush1.msra.mxu0 0.0
  %76 = vmatprep.subr.mxu0 0.0
  %77 = vmatpush1.msra.mxu0 0.0
  %78 = vmatprep.subr.mxu0 0.0
  %79 = vmatpush1.msra.mxu0 0.0
  %80 = vmatprep.subr.mxu0 0.0
  %81 = vmatpush1.msra.mxu0 0.0
  %82 = vmatprep.subr.mxu0 0.0
  %83 = vmatpush1.msra.mxu0 0.0
  %84 = vmatprep.subr.mxu0 0.0
  %85 = vmatpush1.msra.mxu0 0.0
  %86 = vmatprep.subr.mxu0 0.0
  %87 = vmatpush1.msra.mxu0 0.0
  %88 = vmatprep.subr.mxu0 0.0
  %89 = vmatpush1.msra.mxu0 0.0
  %90 = vmatprep.subr.mxu0 0.0
  %91 = vmatpush1.msra.mxu0 0.0
  %92 = vmatprep.subr.mxu0 0.0
  %93 = vmatpush1.msra.mxu0 0.0
  %94 = vmatprep.mubr.f32.mxu0 0.0
  %95 = vmatmul.mubr.f32.gmra.mrb[0].mxu0 %v28
  %v96 = vpop.f32.mrb[0].mxu0
  %v97 = vadd.f32 %v24, %v96
  %v98 = vpop.f32.mrb[0].mxu0
  %99 = vdwg.mxu0
  %v100 = vmul.f32 %v97, 0.5
  %v101 = vtanh.pop %v100
  %v102 = vmul.f32 %v101, 0.5
  %v103 = vadd.f32 %v102, 0.5
  %vm104 = vcmask 31744
  %105 = vst.msk [vmem:[%s3] sm:$0xff] %vm104, %v103
  // Predicated region
  $region14: #{tpu_custom_call.1} parent=0 // pred_check
    _
  $region15: #{tpu_custom_call.1} parent=0 // pred_check_branch
    %107 = sbr.rel (0) target = $region17
  $region16: #{tpu_custom_call.1} parent=0 // pred_region
    _
  $region17: #{tpu_custom_call.1} parent=0 // pred_fallthru
    _
  // Predicated region
  $region18: #{tpu_custom_call.1} parent=0 // pred_check
    _
  $region19: #{tpu_custom_call.1} parent=0 // pred_check_branch
    %109 = sbr.rel (0) target = $region21
  $region20: #{tpu_custom_call.1} parent=0 // pred_region
    _
  $region21: #{tpu_custom_call.1} parent=0 // pred_fallthru
    _

</llo_original>
